<compile_context>
chip_gen: v7x
topology: tpu7x:2x2x1
jax: 0.10.0
libtpu: 0.0.40
codegen_flags: <defaults>
</compile_context>

<pallas_src>
import math

import jax
import jax.numpy as jnp
from jax.experimental import pallas as pl
from jax.experimental.pallas import tpu as pltpu


# ----------------------------------------------------------------------------
# Fused kernel factory: 3 matmuls over a single packed weight slab.
# ----------------------------------------------------------------------------
def _make_fused_kernel(num_inputs, packed_width, out_pad):
    NI, PW, OP = num_inputs, packed_width, out_pad

    def kernel(x_ref, w_ref, b_ref, out_ref):
        # x: (B, NI) f32 -> bf16 for the MXU.
        x = x_ref[...].astype(jnp.bfloat16)

        # Static row-slices of the single packed bf16 weight slab.
        w1 = w_ref[0:NI, 0:PW]                  # (NI, 5H)
        w2 = w_ref[NI:NI + PW, 0:PW]            # (5H, 5H)
        w3 = w_ref[NI + PW:NI + 2 * PW, 0:OP]   # (5H, OUT_PAD)

        # Bias rows (f32) from the packed bias slab.
        b1 = b_ref[0:1, 0:PW]
        b2 = b_ref[1:2, 0:PW]
        b3 = b_ref[2:3, 0:OP]

        # bf16 MXU inputs, f32 accumulation, f32 bias add + tanh (VPU/EUP).
        h = jnp.tanh(jnp.dot(x, w1, preferred_element_type=jnp.float32) + b1)
        h = jnp.tanh(
            jnp.dot(h.astype(jnp.bfloat16), w2,
                    preferred_element_type=jnp.float32) + b2)
        out_ref[...] = (
            jnp.dot(h.astype(jnp.bfloat16), w3,
                    preferred_element_type=jnp.float32) + b3
        ).astype(out_ref.dtype)

    return kernel


# ----------------------------------------------------------------------------
# Parameter construction (deterministic orthogonal init, zero biases), mirrors
# SplitPolicyBase.__init__.  Per-head / critic f32 weights are kept for the
# reference check; the kernel consumes two packed slabs.
# ----------------------------------------------------------------------------
def init_params(key, num_inputs, num_outputs, hidden_size=64):
    assert num_inputs % 4 == 0
    assert num_outputs % 4 == 0
    each_in = num_inputs // 4
    each_out = num_outputs // 4
    H = hidden_size
    PW = 5 * H                                  # 4 actor heads + critic block
    OUT_PAD = max(128, -(-(num_outputs + 1) // 128) * 128)   # lane-dense out
    SLAB_W = max(PW, OUT_PAD)

    def orth(k, shape, gain):
        return jax.nn.initializers.orthogonal(scale=gain)(k, shape, jnp.float32)

    keys = jax.random.split(key, 15)

    # --- per-head actor weights (semantic ground truth) ---
    heads = []
    for i in range(4):
        k1, k2, k3 = keys[3 * i], keys[3 * i + 1], keys[3 * i + 2]
        heads.append(dict(
            w1=orth(k1, (each_in, H), math.sqrt(2.0)),
            b1=jnp.zeros((H,), jnp.float32),
            w2=orth(k2, (H, H), math.sqrt(2.0)),
            b2=jnp.zeros((H,), jnp.float32),
            w3=orth(k3, (H, each_out), 0.02),
            b3=jnp.zeros((each_out,), jnp.float32),
        ))

    # --- critic over the full input, final gain 1.0, output dim 1 ---
    critic = dict(
        w1=orth(keys[12], (num_inputs, H), math.sqrt(2.0)),
        b1=jnp.zeros((H,), jnp.float32),
        w2=orth(keys[13], (H, H), math.sqrt(2.0)),
        b2=jnp.zeros((H,), jnp.float32),
        w3=orth(keys[14], (H, 1), 1.0),
        b3=jnp.zeros((1,), jnp.float32),
    )

    # --- pack actors (block-diagonal) + critic (5th block) into 3 layers ---
    w1 = jnp.zeros((num_inputs, SLAB_W), jnp.float32)
    w2 = jnp.zeros((PW, SLAB_W), jnp.float32)
    w3 = jnp.zeros((PW, SLAB_W), jnp.float32)
    b1 = jnp.zeros((SLAB_W,), jnp.float32)
    b2 = jnp.zeros((SLAB_W,), jnp.float32)
    b3 = jnp.zeros((SLAB_W,), jnp.float32)
    for i, hp in enumerate(heads):
        w1 = w1.at[i * each_in:(i + 1) * each_in, i * H:(i + 1) * H].set(hp["w1"])
        w2 = w2.at[i * H:(i + 1) * H, i * H:(i + 1) * H].set(hp["w2"])
        w3 = w3.at[i * H:(i + 1) * H, i * each_out:(i + 1) * each_out].set(hp["w3"])
        b1 = b1.at[i * H:(i + 1) * H].set(hp["b1"])
        b2 = b2.at[i * H:(i + 1) * H].set(hp["b2"])
        b3 = b3.at[i * each_out:(i + 1) * each_out].set(hp["b3"])
    w1 = w1.at[:, 4 * H:5 * H].set(critic["w1"])
    w2 = w2.at[4 * H:5 * H, 4 * H:5 * H].set(critic["w2"])
    w3 = w3.at[4 * H:5 * H, num_outputs:num_outputs + 1].set(critic["w3"])
    b1 = b1.at[4 * H:5 * H].set(critic["b1"])
    b2 = b2.at[4 * H:5 * H].set(critic["b2"])
    b3 = b3.at[num_outputs:num_outputs + 1].set(critic["b3"])

    # One bf16 weight slab (rows: W1 | W2 | W3) + one f32 bias slab (3 rows).
    w_slab = jnp.concatenate([w1, w2, w3], axis=0).astype(jnp.bfloat16)
    b_slab = jnp.stack([b1, b2, b3], axis=0)     # (3, SLAB_W) f32

    return dict(
        w_slab=w_slab, b_slab=b_slab,
        num_inputs=num_inputs, num_outputs=num_outputs,
        hidden_size=H, packed_width=PW, out_pad=OUT_PAD,
        heads=heads, critic=critic, each_in=each_in,
    )


# ----------------------------------------------------------------------------
# Forward pass (matches SplitPolicyBase.forward semantics)
# ----------------------------------------------------------------------------
def split_policy_forward(params, inputs, rnn_hxs, masks):
    # TODO(synk): rnn_hxs / masks are pass-through (module is non-recurrent).
    B = inputs.shape[0]
    NI = params["num_inputs"]
    NO = params["num_outputs"]
    PW = params["packed_width"]
    OUT_PAD = params["out_pad"]

    vmem = pl.BlockSpec(memory_space=pltpu.MemorySpace.VMEM)

    out = pl.pallas_call(
        _make_fused_kernel(NI, PW, OUT_PAD),
        out_shape=jax.ShapeDtypeStruct((B, OUT_PAD), jnp.float32),
        in_specs=[vmem, vmem, vmem],
        out_specs=vmem,
    )(inputs.astype(jnp.float32), params["w_slab"], params["b_slab"])

    action_mean = out[:, :NO]
    value = out[:, NO:NO + 1]
    return value, action_mean, rnn_hxs


# ----------------------------------------------------------------------------
# Pure-JAX reference built from the UNPACKED per-head weights, mirroring the
# kernel's bf16-matmul / f32-accumulate / f32-tanh numerics.  Verifies both
# the MLP math and the block-diagonal + critic-fusion packing.
# ----------------------------------------------------------------------------
def _bf16_linear(x_f32, w_f32, b_f32):
    return jnp.dot(x_f32.astype(jnp.bfloat16), w_f32.astype(jnp.bfloat16),
                   preferred_element_type=jnp.float32) + b_f32


def _reference_forward(params, inputs, rnn_hxs, masks):
    x = inputs.astype(jnp.float32)

    c = params["critic"]
    h = jnp.tanh(_bf16_linear(x, c["w1"], c["b1"]))
    h = jnp.tanh(_bf16_linear(h, c["w2"], c["b2"]))
    value = _bf16_linear(h, c["w3"], c["b3"])

    each_in = params["each_in"]
    ys = []
    for i, hp in enumerate(params["heads"]):
        xi = x[:, i * each_in:(i + 1) * each_in]
        g = jnp.tanh(_bf16_linear(xi, hp["w1"], hp["b1"]))
        g = jnp.tanh(_bf16_linear(g, hp["w2"], hp["b2"]))
        ys.append(_bf16_linear(g, hp["w3"], hp["b3"]))
    return value, jnp.concatenate(ys, axis=1), rnn_hxs


if __name__ == "__main__":
    key = jax.random.PRNGKey(0)
    k_param, k_x = jax.random.split(key)

    B = 2
    num_inputs = 32     # -> each_num_input = 8
    num_outputs = 8     # -> each_num_output = 2
    hidden_size = 64

    params = init_params(k_param, num_inputs, num_outputs, hidden_size)

    x = jax.random.normal(k_x, (B, num_inputs), dtype=jnp.float32)
    rnn_hxs = jnp.zeros((B, 1), dtype=jnp.float32)
    masks = jnp.ones((B, 1), dtype=jnp.float32)

    value, action_mean, rnn_out = split_policy_forward(params, x, rnn_hxs, masks)
    jax.block_until_ready((value, action_mean, rnn_out))

    # Sanity-check against a pure-JAX per-head reference with matching
    # bf16-input / f32-accumulate numerics.
    v_ref, a_ref, _ = _reference_forward(params, x, rnn_hxs, masks)
    assert value.shape == (B, 1)
    assert action_mean.shape == (B, num_outputs)
    assert jnp.allclose(value, v_ref, atol=2e-3, rtol=2e-3)
    assert jnp.allclose(action_mean, a_ref, atol=2e-3, rtol=2e-3)

    print("KERNEL_OK")
</pallas_src>

<mosaic_0001>
module attributes {stable_mosaic.version = 11 : i64} {
  func.func @kernel(%arg0: memref<2x32xf32, #tpu.memory_space<vmem>>, %arg1: memref<672x320xbf16, #tpu.memory_space<vmem>>, %arg2: memref<3x320xf32, #tpu.memory_space<vmem>>, %arg3: memref<2x128xf32, #tpu.memory_space<vmem>>) attributes {dimension_semantics = [], scalar_prefetch = 0 : i64, scratch_operands = 0 : i64, tpu.core_type = #tpu.core_type<tc>} {
    %c0 = arith.constant 0 : index
    %c0_0 = arith.constant 0 : index
    %0 = vector.load %arg0[%c0, %c0_0] : memref<2x32xf32, #tpu.memory_space<vmem>>, vector<2x32xf32>
    %1 = arith.truncf %0 : vector<2x32xf32> to vector<2x32xbf16>
    %c0_1 = arith.constant 0 : index
    %c0_2 = arith.constant 0 : index
    %2 = vector.load %arg1[%c0_1, %c0_2] : memref<672x320xbf16, #tpu.memory_space<vmem>>, vector<32x320xbf16>
    %c32 = arith.constant 32 : index
    %c0_3 = arith.constant 0 : index
    %3 = vector.load %arg1[%c32, %c0_3] : memref<672x320xbf16, #tpu.memory_space<vmem>>, vector<320x320xbf16>
    %c352 = arith.constant 352 : index
    %c0_4 = arith.constant 0 : index
    %4 = vector.load %arg1[%c352, %c0_4] : memref<672x320xbf16, #tpu.memory_space<vmem>>, vector<320x128xbf16>
    %c0_5 = arith.constant 0 : index
    %c0_6 = arith.constant 0 : index
    %5 = vector.load %arg2[%c0_5, %c0_6] : memref<3x320xf32, #tpu.memory_space<vmem>>, vector<1x320xf32>
    %c1 = arith.constant 1 : index
    %c0_7 = arith.constant 0 : index
    %6 = vector.load %arg2[%c1, %c0_7] : memref<3x320xf32, #tpu.memory_space<vmem>>, vector<1x320xf32>
    %c2 = arith.constant 2 : index
    %c0_8 = arith.constant 0 : index
    %7 = vector.load %arg2[%c2, %c0_8] : memref<3x320xf32, #tpu.memory_space<vmem>>, vector<1x128xf32>
    %cst = arith.constant dense<0.000000e+00> : vector<2x320xf32>
    %8 = tpu.matmul %1, %2, %cst {dimension_numbers = #tpu.dot_dimension_numbers<[1], [0], [0], [1], [0, 0, 1, 1], [], []>} : vector<2x32xbf16>, vector<32x320xbf16>, vector<2x320xf32> -> vector<2x320xf32>
    %9 = vector.broadcast %5 : vector<1x320xf32> to vector<2x320xf32>
    %10 = arith.addf %8, %9 : vector<2x320xf32>
    %11 = math.tanh %10 : vector<2x320xf32>
    %12 = arith.truncf %11 : vector<2x320xf32> to vector<2x320xbf16>
    %cst_9 = arith.constant dense<0.000000e+00> : vector<2x320xf32>
    %13 = tpu.matmul %12, %3, %cst_9 {dimension_numbers = #tpu.dot_dimension_numbers<[1], [0], [0], [1], [0, 0, 1, 1], [], []>} : vector<2x320xbf16>, vector<320x320xbf16>, vector<2x320xf32> -> vector<2x320xf32>
    %14 = vector.broadcast %6 : vector<1x320xf32> to vector<2x320xf32>
    %15 = arith.addf %13, %14 : vector<2x320xf32>
    %16 = math.tanh %15 : vector<2x320xf32>
    %17 = arith.truncf %16 : vector<2x320xf32> to vector<2x320xbf16>
    %cst_10 = arith.constant dense<0.000000e+00> : vector<2x128xf32>
    %18 = tpu.matmul %17, %4, %cst_10 {dimension_numbers = #tpu.dot_dimension_numbers<[1], [0], [0], [1], [0, 0, 1, 1], [], []>} : vector<2x320xbf16>, vector<320x128xbf16>, vector<2x128xf32> -> vector<2x128xf32>
    %19 = vector.broadcast %7 : vector<1x128xf32> to vector<2x128xf32>
    %20 = arith.addf %18, %19 : vector<2x128xf32>
    %c0_11 = arith.constant 0 : index
    %c0_12 = arith.constant 0 : index
    %21 = vector.load %arg3[%c0_11, %c0_12] : memref<2x128xf32, #tpu.memory_space<vmem>>, vector<2x128xf32>
    tpu.vector_store %arg3[%c0_11, %c0_12], %20 {strides = array<i32>} : memref<2x128xf32, #tpu.memory_space<vmem>>, vector<2x128xf32>,
    return
  }
}

</mosaic_0001>

<llo_original>
// kernel: tpu_custom_call.1
$region0: #{tpu_custom_call.1}
  #allocation0 [shape = 'u32[]', space=smem, size = 0x4, offset = 0x4, fixed_abs, tag = 'smem constant byte address 0x4 - core index']
  #allocation1 [shape = 'u32[144,128]{1,0:T(1,128)}', space=vmem, size = 0x12000, scoped, tag = 'internal scratch']
  %s0 = inlined_call_operand.vmem [shape: f32[2,32], index: 0, kind: input, shape index: {}]
  %s1 = inlined_call_operand.vmem [shape: bf16[672,320], index: 1, kind: input, shape index: {}]
  %s2 = inlined_call_operand.vmem [shape: f32[3,320], index: 2, kind: input, shape index: {}]
  %s3 = inlined_call_operand.hbm [shape: f32[2,128], index: 3, kind: output, shape index: {}]
  %s4 = sld [smem:[#allocation0]]
  $region22: #{tpu_custom_call.1} parent=0
    _
  %s6 = ssub.s32 1, %s4
  %s7 = scalar_select 0, %s6, %s4
  $region1: #{tpu_custom_call.1} parent=0
    #allocation2 [shape = 'u8[1024]{0}', space=vmem, size = 0x400, scoped, tag = 'output window, operand 0, single buffered']
    #allocation3 [shape = 's32[1]{0}', space=sflag, size = 0x4, scoped, tag = 'scoped memory for tpu_custom_call.1']
    %8 = vsyncpa [#allocation3], 0
    // Predicated region
    $region2: #{tpu_custom_call.1} parent=1 // pred_check
      _
    $region3: #{tpu_custom_call.1} parent=1 // pred_check_branch
      %10 = sbr.rel (0) target = $region5
    $region4: #{tpu_custom_call.1} parent=1 // pred_region
      _
    $region5: #{tpu_custom_call.1} parent=1 // pred_fallthru
      _
    // Predicated region
    $region6: #{tpu_custom_call.1} parent=1 // pred_check
      _
    $region7: #{tpu_custom_call.1} parent=1 // pred_check_branch
      %12 = sbr.rel (0) target = $region9
    $region8: #{tpu_custom_call.1} parent=1 // pred_region
      _
    $region9: #{tpu_custom_call.1} parent=1 // pred_fallthru
      _
    // Predicated region
    $region10: #{tpu_custom_call.1} parent=1 // pred_check
      _
    $region11: #{tpu_custom_call.1} parent=1 // pred_check_branch
      %14 = sbr.rel (0) target = $region13
    $region12: #{tpu_custom_call.1} parent=1 // pred_region
      _
    $region13: #{tpu_custom_call.1} parent=1 // pred_fallthru
      _
    %v16 = vld [vmem:[%s0] sm:$0x3]
    %v17 = vpack.c.bf16 %v16, %v16
    %v18 = vld [vmem:[%s1] sm:$0xff]
    %v19 = vld [vmem:[%s1 + $0x8] sm:$0xf]
    %v20 = vld [vmem:[%s1 + $0xc] sm:$0xff]
    %v21 = vld [vmem:[%s1 + $0x14] sm:$0xf]
    %v22 = vld [vmem:[%s1 + $0x18] sm:$0xff]
    %v23 = vld [vmem:[%s1 + $0x20] sm:$0xf]
    %v24 = vld [vmem:[%s1 + $0x24] sm:$0xff]
    %v25 = vld [vmem:[%s1 + $0x2c] sm:$0xf]
    %v26 = vld [vmem:[%s1 + $0x30] sm:$0xff]
    %v27 = vld [vmem:[%s1 + $0x38] sm:$0xf]
    %v28 = vld [vmem:[%s1 + $0x3c] sm:$0xff]
    %v29 = vld [vmem:[%s1 + $0x44] sm:$0xf]
    %v30 = vld [vmem:[%s1 + $0x48] sm:$0xff]
    %v31 = vld [vmem:[%s1 + $0x50] sm:$0xf]
    %v32 = vld [vmem:[%s1 + $0x54] sm:$0xff]
    %v33 = vld [vmem:[%s1 + $0x5c] sm:$0xf]
    %v34 = vld [vmem:[%s1 + $0x60] sm:$0xff]
    %v35 = vld [vmem:[%s1 + $0x68] sm:$0xf]
    %v36 = vld [vmem:[%s1 + $0x6c] sm:$0xff]
    %v37 = vld [vmem:[%s1 + $0x74] sm:$0xf]
    %v38 = vld [vmem:[%s1 + $0x78] sm:$0xff]
    %v39 = vld [vmem:[%s1 + $0x80] sm:$0xf]
    %v40 = vld [vmem:[%s1 + $0x84] sm:$0xff]
    %v41 = vld [vmem:[%s1 + $0x8c] sm:$0xf]
    %v42 = vld [vmem:[%s1 + $0x90] sm:$0xff]
    %v43 = vld [vmem:[%s1 + $0x98] sm:$0xf]
    %v44 = vld [vmem:[%s1 + $0x9c] sm:$0xff]
    %v45 = vld [vmem:[%s1 + $0xa4] sm:$0xf]
    %v46 = vld [vmem:[%s1 + $0xa8] sm:$0xff]
    %v47 = vld [vmem:[%s1 + $0xb0] sm:$0xf]
    %v48 = vld [vmem:[%s1 + $0xb4] sm:$0xff]
    %v49 = vld [vmem:[%s1 + $0xbc] sm:$0xf]
    %v50 = vld [vmem:[%s1 + $0xc0] sm:$0xff]
    %v51 = vld [vmem:[%s1 + $0xc8] sm:$0xf]
    %v52 = vld [vmem:[%s1 + $0xcc] sm:$0xff]
    %v53 = vld [vmem:[%s1 + $0xd4] sm:$0xf]
    %v54 = vld [vmem:[%s1 + $0xd8] sm:$0xff]
    %v55 = vld [vmem:[%s1 + $0xe0] sm:$0xf]
    %v56 = vld [vmem:[%s1 + $0xe4] sm:$0xff]
    %v57 = vld [vmem:[%s1 + $0xec] sm:$0xf]
    %v58 = vld [vmem:[%s1 + $0xf0] sm:$0xff]
    %v59 = vld [vmem:[%s1 + $0xf8] sm:$0xf]
    %v60 = vld [vmem:[%s1 + $0xfc] sm:$0xff]
    %v61 = vld [vmem:[%s1 + $0x104] sm:$0xf]
    %v62 = vld [vmem:[%s1 + $0x108] sm:$0xff]
    %v63 = vld [vmem:[%s1 + $0x110] sm:$0xf]
    %v64 = vld [vmem:[%s1 + $0x114] sm:$0xff]
    %v65 = vld [vmem:[%s1 + $0x11c] sm:$0xf]
    %v66 = vld [vmem:[%s1 + $0x120] sm:$0xff]
    %v67 = vld [vmem:[%s1 + $0x128] sm:$0xf]
    %v68 = vld [vmem:[%s1 + $0x12c] sm:$0xff]
    %v69 = vld [vmem:[%s1 + $0x134] sm:$0xf]
    %v70 = vld [vmem:[%s1 + $0x138] sm:$0xff]
    %v71 = vld [vmem:[%s1 + $0x140] sm:$0xf]
    %v72 = vld [vmem:[%s1 + $0x144] sm:$0xff]
    %v73 = vld [vmem:[%s1 + $0x14c] sm:$0xf]
    %v74 = vld [vmem:[%s1 + $0x150] sm:$0xff]
    %v75 = vld [vmem:[%s1 + $0x158] sm:$0xf]
    %v76 = vld [vmem:[%s1 + $0x15c] sm:$0xff]
    %v77 = vld [vmem:[%s1 + $0x164] sm:$0xf]
    %v78 = vld [vmem:[%s1 + $0x168] sm:$0xff]
    %v79 = vld [vmem:[%s1 + $0x170] sm:$0xf]
    %v80 = vld [vmem:[%s1 + $0x174] sm:$0xff]
    %v81 = vld [vmem:[%s1 + $0x17c] sm:$0xf]
    %v82 = vld [vmem:[%s1 + $0x180] sm:$0xff]
    %v83 = vld [vmem:[%s1 + $0x188] sm:$0xf]
    %v84 = vld [vmem:[%s1 + $0x18c] sm:$0xff]
    %v85 = vld [vmem:[%s1 + $0x194] sm:$0xf]
    %v86 = vld [vmem:[%s1 + $0x198] sm:$0xff]
    %v87 = vld [vmem:[%s1 + $0x1a0] sm:$0xf]
    %v88 = vld [vmem:[%s1 + $0x1a4] sm:$0xff]
    %v89 = vld [vmem:[%s1 + $0x1ac] sm:$0xf]
    %v90 = vld [vmem:[%s1 + $0x1b0] sm:$0xff]
    %v91 = vld [vmem:[%s1 + $0x1b8] sm:$0xf]
    %v92 = vld [vmem:[%s1 + $0x1bc] sm:$0xff]
    %v93 = vld [vmem:[%s1 + $0x1c4] sm:$0xf]
    %v94 = vld [vmem:[%s1 + $0x1c8] sm:$0xff]
    %v95 = vld [vmem:[%s1 + $0x1d0] sm:$0xf]
    %v96 = vld [vmem:[%s1 + $0x1d4] sm:$0xff]
    %v97 = vld [vmem:[%s1 + $0x1dc] sm:$0xf]
    %v98 = vld [vmem:[%s1 + $0x1e0] sm:$0xff]
    %v99 = vld [vmem:[%s1 + $0x1e8] sm:$0xf]
    %v100 = vld [vmem:[%s1 + $0x1ec] sm:$0xff]
    %v101 = vld [vmem:[%s1 + $0x1f4] sm:$0xf]
    %v102 = vld [vmem:[%s1 + $0x1f8] sm:$0xff]
    %v103 = vld [vmem:[%s1 + $0x200] sm:$0xf]
    %v104 = vld [vmem:[%s1 + $0x204] sm:$0xff]
    %v105 = vld [vmem:[%s1 + $0x20c] sm:$0xf]
    %v106 = vld [vmem:[%s1 + $0x210] sm:$0xf]
    %v107 = vld [vmem:[%s1 + $0x21c] sm:$0xf]
    %v108 = vld [vmem:[%s1 + $0x228] sm:$0xf]
    %v109 = vld [vmem:[%s1 + $0x234] sm:$0xf]
    %v110 = vld [vmem:[%s1 + $0x240] sm:$0xf]
    %v111 = vld [vmem:[%s1 + $0x24c] sm:$0xf]
    %v112 = vld [vmem:[%s1 + $0x258] sm:$0xf]
    %v113 = vld [vmem:[%s1 + $0x264] sm:$0xf]
    %v114 = vld [vmem:[%s1 + $0x270] sm:$0xf]
    %v115 = vld [vmem:[%s1 + $0x27c] sm:$0xf]
    %v116 = vld [vmem:[%s1 + $0x288] sm:$0xf]
    %v117 = vld [vmem:[%s1 + $0x294] sm:$0xf]
    %v118 = vld [vmem:[%s1 + $0x2a0] sm:$0xf]
    %v119 = vld [vmem:[%s1 + $0x2ac] sm:$0xf]
    %v120 = vld [vmem:[%s1 + $0x2b8] sm:$0xf]
    %v121 = vld [vmem:[%s1 + $0x2c4] sm:$0xf]
    %v122 = vld [vmem:[%s1 + $0x2d0] sm:$0xf]
    %v123 = vld [vmem:[%s1 + $0x2dc] sm:$0xf]
    %v124 = vld [vmem:[%s1 + $0x2e8] sm:$0xf]
    %v125 = vld [vmem:[%s1 + $0x2f4] sm:$0xf]
    %v126 = vld [vmem:[%s1 + $0x300] sm:$0xf]
    %v127 = vld [vmem:[%s1 + $0x30c] sm:$0xf]
    %v128 = vld [vmem:[%s1 + $0x318] sm:$0xf]
    %v129 = vld [vmem:[%s1 + $0x324] sm:$0xf]
    %v130 = vld [vmem:[%s1 + $0x330] sm:$0xf]
    %v131 = vld [vmem:[%s1 + $0x33c] sm:$0xf]
    %v132 = vld [vmem:[%s1 + $0x348] sm:$0xf]
    %v133 = vld [vmem:[%s1 + $0x354] sm:$0xf]
    %v134 = vld [vmem:[%s1 + $0x360] sm:$0xf]
    %v135 = vld [vmem:[%s1 + $0x36c] sm:$0xf]
    %v136 = vld [vmem:[%s1 + $0x378] sm:$0xf]
    %v137 = vld [vmem:[%s1 + $0x384] sm:$0xf]
    %v138 = vld [vmem:[%s1 + $0x390] sm:$0xf]
    %v139 = vld [vmem:[%s1 + $0x39c] sm:$0xf]
    %v140 = vld [vmem:[%s1 + $0x3a8] sm:$0xf]
    %v141 = vld [vmem:[%s1 + $0x3b4] sm:$0xf]
    %v142 = vld [vmem:[%s1 + $0x3c0] sm:$0xf]
    %v143 = vld [vmem:[%s1 + $0x3cc] sm:$0xf]
    %v144 = vld [vmem:[%s1 + $0x3d8] sm:$0xf]
    %v145 = vld [vmem:[%s1 + $0x3e4] sm:$0xf]
    %v146 = vld [vmem:[%s2] ss:$4 sm:$0x7]
    %s147 = scalar_lea.vmem %s2, 1
    %v148 = vld [vmem:[%s147] ss:$4 sm:$0x7]
    %v149 = vld [vmem:[%s2 + $0x2] sm:$0x1]
    %v151 = vlaneseq
    %v152 = vshrl.u32 %v151, 7
    %v153 = vsub.s32 0, %v152
    %v154 = vrot.slane %v146, %v153
    %v155 = vlaneseq
    %v156 = vshrl.u32 %v155, 7
    %v157 = vsub.s32 1, %v156
    %v158 = vrot.slane %v146, %v157
    %v159 = vlaneseq
    %v160 = vshrl.u32 %v159, 7
    %v161 = vsub.s32 2, %v160
    %v162 = vrot.slane %v146, %v161
    %v174 = vunpack.c.l.b16 %v18
    %v175 = vunpack.c.h.b16 %v18
    %v176 = vunpack.c.l.b16 %v19
    %v177 = vunpack.c.l.b16 %v20
    %v178 = vunpack.c.h.b16 %v20
    %v179 = vunpack.c.l.b16 %v21
    %v180 = vunpack.c.l.b16 %v22
    %v181 = vunpack.c.h.b16 %v22
    %v182 = vunpack.c.l.b16 %v23
    %v183 = vunpack.c.l.b16 %v24
    %v184 = vunpack.c.h.b16 %v24
    %v185 = vunpack.c.l.b16 %v25
    %v186 = vpack.c.b16 %v177, %v174
    %v187 = vpack.c.b16 %v178, %v175
    %v188 = vpack.c.b16 %v179, %v176
    %v189 = vpack.c.b16 %v183, %v180
    %v190 = vpack.c.b16 %v184, %v181
    %v191 = vpack.c.b16 %v185, %v182
    %vm198 = vcmask 261120
    %v200 = vsel %vm198, %v17, 0
    %202 = vmatprep.subr.bf16.mxu0 %v187
    %203 = vmatpush1.bf16.msra.mxu0 %v186
    %204 = vmatprep.subr.bf16.mxu0 %v190
    %205 = vmatpush1.bf16.msra.mxu0 %v189
    %206 = vmatprep.subr.bf16.mxu0 0
    %207 = vmatpush1.bf16.msra.mxu0 0
    %208 = vmatprep.subr.bf16.mxu0 0
    %209 = vmatpush1.bf16.msra.mxu0 0
    %210 = vmatprep.subr.bf16.mxu0 0
    %211 = vmatpush1.bf16.msra.mxu0 0
    %212 = vmatprep.subr.bf16.mxu0 0
    %213 = vmatpush1.bf16.msra.mxu0 0
    %214 = vmatprep.subr.bf16.mxu0 0
    %215 = vmatpush1.bf16.msra.mxu0 0
    %216 = vmatprep.subr.bf16.mxu0 0
    %217 = vmatpush1.bf16.msra.mxu0 0
    %218 = vmatprep.subr.bf16.mxu0 0
    %219 = vmatpush1.bf16.msra.mxu0 0
    %220 = vmatprep.subr.bf16.mxu0 0
    %221 = vmatpush1.bf16.msra.mxu0 0
    %222 = vmatprep.subr.bf16.mxu0 0
    %223 = vmatpush1.bf16.msra.mxu0 0
    %224 = vmatprep.subr.bf16.mxu0 0
    %225 = vmatpush1.bf16.msra.mxu0 0
    %226 = vmatprep.subr.bf16.mxu0 0
    %227 = vmatpush1.bf16.msra.mxu0 0
    %228 = vmatprep.subr.bf16.mxu0 0
    %229 = vmatpush1.bf16.msra.mxu0 0
    %230 = vmatprep.subr.bf16.mxu0 0
    %231 = vmatpush1.bf16.msra.mxu0 0
    %232 = vmatprep.subr.bf16.mxu0 0
    %233 = vmatpush1.bf16.msra.mxu0 0
    %234 = vmatprep.mubr.bf16.mxu0 0
    %235 = vmatmul.mubr.bf16.gmra.mrb[0].mxu0 %v200
    %v236 = vpop.f32.mrb[0].mxu0
    %v237 = vadd.f32 %v154, %v236
    %v238 = vpop.f32.mrb[0].mxu0
    %v239 = vadd.f32 %v158, %v238
    %v240 = vpop.f32.mrb[0].mxu0
    %v241 = vpop.f32.mrb[0].mxu0
    %242 = vdwg.mxu0
    %243 = vmatprep.subr.bf16.mxu0 0
    %244 = vmatpush1.bf16.msra.mxu0 %v188
    %245 = vmatprep.subr.bf16.mxu0 0
    %246 = vmatpush1.bf16.msra.mxu0 %v191
    %247 = vmatprep.subr.bf16.mxu0 0
    %248 = vmatpush1.bf16.msra.mxu0 0
    %249 = vmatprep.subr.bf16.mxu0 0
    %250 = vmatpush1.bf16.msra.mxu0 0
    %251 = vmatprep.subr.bf16.mxu0 0
    %252 = vmatpush1.bf16.msra.mxu0 0
    %253 = vmatprep.subr.bf16.mxu0 0
    %254 = vmatpush1.bf16.msra.mxu0 0
    %255 = vmatprep.subr.bf16.mxu0 0
    %256 = vmatpush1.bf16.msra.mxu0 0
    %257 = vmatprep.subr.bf16.mxu0 0
    %258 = vmatpush1.bf16.msra.mxu0 0
    %259 = vmatprep.subr.bf16.mxu0 0
    %260 = vmatpush1.bf16.msra.mxu0 0
    %261 = vmatprep.subr.bf16.mxu0 0
    %262 = vmatpush1.bf16.msra.mxu0 0
    %263 = vmatprep.subr.bf16.mxu0 0
    %264 = vmatpush1.bf16.msra.mxu0 0
    %265 = vmatprep.subr.bf16.mxu0 0
    %266 = vmatpush1.bf16.msra.mxu0 0
    %267 = vmatprep.subr.bf16.mxu0 0
    %268 = vmatpush1.bf16.msra.mxu0 0
    %269 = vmatprep.subr.bf16.mxu0 0
    %270 = vmatpush1.bf16.msra.mxu0 0
    %271 = vmatprep.subr.bf16.mxu0 0
    %272 = vmatpush1.bf16.msra.mxu0 0
    %273 = vmatprep.subr.bf16.mxu0 0
    %274 = vmatpush1.bf16.msra.mxu0 0
    %275 = vmatprep.mubr.bf16.mxu0 0
    %276 = vmatmul.mubr.bf16.gmra.mrb[0].mxu0 %v200
    %v277 = vpop.f32.mrb[0].mxu0
    %v278 = vadd.f32 %v162, %v277
    %v279 = vpop.f32.mrb[0].mxu0
    %v280 = vpop.f32.mrb[0].mxu0
    %v281 = vpop.f32.mrb[0].mxu0
    %282 = vdwg.mxu0
    %v283 = vtanh.pop %v237
    %v284 = vtanh.pop %v239
    %v285 = vtanh.pop %v278
    %v286 = vpack.c.bf16 %v283, %v283
    %v287 = vpack.c.bf16 %v284, %v284
    %v288 = vpack.c.bf16 %v285, %v285
    %v290 = vlaneseq
    %v291 = vshrl.u32 %v290, 7
    %v292 = vsub.s32 0, %v291
    %v293 = vrot.slane %v148, %v292
    %v294 = vlaneseq
    %v295 = vshrl.u32 %v294, 7
    %v296 = vsub.s32 1, %v295
    %v297 = vrot.slane %v148, %v296
    %v298 = vlaneseq
    %v299 = vshrl.u32 %v298, 7
    %v300 = vsub.s32 2, %v299
    %v301 = vrot.slane %v148, %v300
    %v385 = vunpack.c.l.b16 %v26
    %v386 = vunpack.c.h.b16 %v26
    %v387 = vunpack.c.l.b16 %v27
    %v388 = vunpack.c.l.b16 %v28
    %v389 = vunpack.c.h.b16 %v28
    %v390 = vunpack.c.l.b16 %v29
    %v391 = vunpack.c.l.b16 %v30
    %v392 = vunpack.c.h.b16 %v30
    %v393 = vunpack.c.l.b16 %v31
    %v394 = vunpack.c.l.b16 %v32
    %v395 = vunpack.c.h.b16 %v32
    %v396 = vunpack.c.l.b16 %v33
    %v397 = vunpack.c.l.b16 %v34
    %v398 = vunpack.c.h.b16 %v34
    %v399 = vunpack.c.l.b16 %v35
    %v400 = vunpack.c.l.b16 %v36
    %v401 = vunpack.c.h.b16 %v36
    %v402 = vunpack.c.l.b16 %v37
    %v403 = vunpack.c.l.b16 %v38
    %v404 = vunpack.c.h.b16 %v38
    %v405 = vunpack.c.l.b16 %v39
    %v406 = vunpack.c.l.b16 %v40
    %v407 = vunpack.c.h.b16 %v40
    %v408 = vunpack.c.l.b16 %v41
    %v409 = vunpack.c.l.b16 %v42
    %v410 = vunpack.c.h.b16 %v42
    %v411 = vunpack.c.l.b16 %v43
    %v412 = vunpack.c.l.b16 %v44
    %v413 = vunpack.c.h.b16 %v44
    %v414 = vunpack.c.l.b16 %v45
    %v415 = vunpack.c.l.b16 %v46
    %v416 = vunpack.c.h.b16 %v46
    %v417 = vunpack.c.l.b16 %v47
    %v418 = vunpack.c.l.b16 %v48
    %v419 = vunpack.c.h.b16 %v48
    %v420 = vunpack.c.l.b16 %v49
    %v421 = vunpack.c.l.b16 %v50
    %v422 = vunpack.c.h.b16 %v50
    %v423 = vunpack.c.l.b16 %v51
    %v424 = vunpack.c.l.b16 %v52
    %v425 = vunpack.c.h.b16 %v52
    %v426 = vunpack.c.l.b16 %v53
    %v427 = vunpack.c.l.b16 %v54
    %v428 = vunpack.c.h.b16 %v54
    %v429 = vunpack.c.l.b16 %v55
    %v430 = vunpack.c.l.b16 %v56
    %v431 = vunpack.c.h.b16 %v56
    %v432 = vunpack.c.l.b16 %v57
    %v433 = vunpack.c.l.b16 %v58
    %v434 = vunpack.c.h.b16 %v58
    %v435 = vunpack.c.l.b16 %v59
    %v436 = vunpack.c.l.b16 %v60
    %v437 = vunpack.c.h.b16 %v60
    %v438 = vunpack.c.l.b16 %v61
    %v439 = vunpack.c.l.b16 %v62
    %v440 = vunpack.c.h.b16 %v62
    %v441 = vunpack.c.l.b16 %v63
    %v442 = vunpack.c.l.b16 %v64
    %v443 = vunpack.c.h.b16 %v64
    %v444 = vunpack.c.l.b16 %v65
    %v445 = vunpack.c.l.b16 %v66
    %v446 = vunpack.c.h.b16 %v66
    %v447 = vunpack.c.l.b16 %v67
    %v448 = vunpack.c.l.b16 %v68
    %v449 = vunpack.c.h.b16 %v68
    %v450 = vunpack.c.l.b16 %v69
    %v451 = vunpack.c.l.b16 %v70
    %v452 = vunpack.c.h.b16 %v70
    %v453 = vunpack.c.l.b16 %v71
    %v454 = vunpack.c.l.b16 %v72
    %v455 = vunpack.c.h.b16 %v72
    %v456 = vunpack.c.l.b16 %v73
    %v457 = vunpack.c.l.b16 %v74
    %v458 = vunpack.c.h.b16 %v74
    %v459 = vunpack.c.l.b16 %v75
    %v460 = vunpack.c.l.b16 %v76
    %v461 = vunpack.c.h.b16 %v76
    %v462 = vunpack.c.l.b16 %v77
    %v463 = vunpack.c.l.b16 %v78
    %v464 = vunpack.c.h.b16 %v78
    %v465 = vunpack.c.l.b16 %v79
    %v466 = vunpack.c.l.b16 %v80
    %v467 = vunpack.c.h.b16 %v80
    %v468 = vunpack.c.l.b16 %v81
    %v469 = vunpack.c.l.b16 %v82
    %v470 = vunpack.c.h.b16 %v82
    %v471 = vunpack.c.l.b16 %v83
    %v472 = vunpack.c.l.b16 %v84
    %v473 = vunpack.c.h.b16 %v84
    %v474 = vunpack.c.l.b16 %v85
    %v475 = vunpack.c.l.b16 %v86
    %v476 = vunpack.c.h.b16 %v86
    %v477 = vunpack.c.l.b16 %v87
    %v478 = vunpack.c.l.b16 %v88
    %v479 = vunpack.c.h.b16 %v88
    %v480 = vunpack.c.l.b16 %v89
    %v481 = vunpack.c.l.b16 %v90
    %v482 = vunpack.c.h.b16 %v90
    %v483 = vunpack.c.l.b16 %v91
    %v484 = vunpack.c.l.b16 %v92
    %v485 = vunpack.c.h.b16 %v92
    %v486 = vunpack.c.l.b16 %v93
    %v487 = vunpack.c.l.b16 %v94
    %v488 = vunpack.c.h.b16 %v94
    %v489 = vunpack.c.l.b16 %v95
    %v490 = vunpack.c.l.b16 %v96
    %v491 = vunpack.c.h.b16 %v96
    %v492 = vunpack.c.l.b16 %v97
    %v493 = vunpack.c.l.b16 %v98
    %v494 = vunpack.c.h.b16 %v98
    %v495 = vunpack.c.l.b16 %v99
    %v496 = vunpack.c.l.b16 %v100
    %v497 = vunpack.c.h.b16 %v100
    %v498 = vunpack.c.l.b16 %v101
    %v499 = vunpack.c.l.b16 %v102
    %v500 = vunpack.c.h.b16 %v102
    %v501 = vunpack.c.l.b16 %v103
    %v502 = vunpack.c.l.b16 %v104
    %v503 = vunpack.c.h.b16 %v104
    %v504 = vunpack.c.l.b16 %v105
    %v505 = vpack.c.b16 %v388, %v385
    %v506 = vpack.c.b16 %v389, %v386
    %v507 = vpack.c.b16 %v390, %v387
    %v508 = vpack.c.b16 %v394, %v391
    %v509 = vpack.c.b16 %v395, %v392
    %v510 = vpack.c.b16 %v396, %v393
    %v511 = vpack.c.b16 %v400, %v397
    %v512 = vpack.c.b16 %v401, %v398
    %v513 = vpack.c.b16 %v402, %v399
    %v514 = vpack.c.b16 %v406, %v403
    %v515 = vpack.c.b16 %v407, %v404
    %v516 = vpack.c.b16 %v408, %v405
    %v517 = vpack.c.b16 %v412, %v409
    %v518 = vpack.c.b16 %v413, %v410
    %v519 = vpack.c.b16 %v414, %v411
    %v520 = vpack.c.b16 %v418, %v415
    %v521 = vpack.c.b16 %v419, %v416
    %v522 = vpack.c.b16 %v420, %v417
    %v523 = vpack.c.b16 %v424, %v421
    %v524 = vpack.c.b16 %v425, %v422
    %v525 = vpack.c.b16 %v426, %v423
    %v526 = vpack.c.b16 %v430, %v427
    %v527 = vpack.c.b16 %v431, %v428
    %v528 = vpack.c.b16 %v432, %v429
    %v529 = vpack.c.b16 %v436, %v433
    %v530 = vpack.c.b16 %v437, %v434
    %v531 = vpack.c.b16 %v438, %v435
    %v532 = vpack.c.b16 %v442, %v439
    %v533 = vpack.c.b16 %v443, %v440
    %v534 = vpack.c.b16 %v444, %v441
    %v535 = vpack.c.b16 %v448, %v445
    %v536 = vpack.c.b16 %v449, %v446
    %v537 = vpack.c.b16 %v450, %v447
    %v538 = vpack.c.b16 %v454, %v451
    %v539 = vpack.c.b16 %v455, %v452
    %v540 = vpack.c.b16 %v456, %v453
    %v541 = vpack.c.b16 %v460, %v457
    %v542 = vpack.c.b16 %v461, %v458
    %v543 = vpack.c.b16 %v462, %v459
    %v544 = vpack.c.b16 %v466, %v463
    %v545 = vpack.c.b16 %v467, %v464
    %v546 = vpack.c.b16 %v468, %v465
    %v547 = vpack.c.b16 %v472, %v469
    %v548 = vpack.c.b16 %v473, %v470
    %v549 = vpack.c.b16 %v474, %v471
    %v550 = vpack.c.b16 %v478, %v475
    %v551 = vpack.c.b16 %v479, %v476
    %v552 = vpack.c.b16 %v480, %v477
    %v553 = vpack.c.b16 %v484, %v481
    %v554 = vpack.c.b16 %v485, %v482
    %v555 = vpack.c.b16 %v486, %v483
    %v556 = vpack.c.b16 %v490, %v487
    %v557 = vpack.c.b16 %v491, %v488
    %v558 = vpack.c.b16 %v492, %v489
    %v559 = vpack.c.b16 %v496, %v493
    %v560 = vpack.c.b16 %v497, %v494
    %v561 = vpack.c.b16 %v498, %v495
    %v562 = vpack.c.b16 %v502, %v499
    %v563 = vpack.c.b16 %v503, %v500
    %v564 = vpack.c.b16 %v504, %v501
    %vm625 = vcmask 523264
    %v627 = vsel %vm625, %v288, 0
    %629 = vmatprep.subr.bf16.mxu0 %v506
    %630 = vmatpush1.bf16.msra.mxu0 %v505
    %631 = vmatprep.subr.bf16.mxu0 %v509
    %632 = vmatpush1.bf16.msra.mxu0 %v508
    %633 = vmatprep.subr.bf16.mxu0 %v512
    %634 = vmatpush1.bf16.msra.mxu0 %v511
    %635 = vmatprep.subr.bf16.mxu0 %v515
    %636 = vmatpush1.bf16.msra.mxu0 %v514
    %637 = vmatprep.subr.bf16.mxu0 %v518
    %638 = vmatpush1.bf16.msra.mxu0 %v517
    %639 = vmatprep.subr.bf16.mxu0 %v521
    %640 = vmatpush1.bf16.msra.mxu0 %v520
    %641 = vmatprep.subr.bf16.mxu0 %v524
    %642 = vmatpush1.bf16.msra.mxu0 %v523
    %643 = vmatprep.subr.bf16.mxu0 %v527
    %644 = vmatpush1.bf16.msra.mxu0 %v526
    %645 = vmatprep.subr.bf16.mxu0 %v530
    %646 = vmatpush1.bf16.msra.mxu0 %v529
    %647 = vmatprep.subr.bf16.mxu0 %v533
    %648 = vmatpush1.bf16.msra.mxu0 %v532
    %649 = vmatprep.subr.bf16.mxu0 %v536
    %650 = vmatpush1.bf16.msra.mxu0 %v535
    %651 = vmatprep.subr.bf16.mxu0 %v539
    %652 = vmatpush1.bf16.msra.mxu0 %v538
    %653 = vmatprep.subr.bf16.mxu0 %v542
    %654 = vmatpush1.bf16.msra.mxu0 %v541
    %655 = vmatprep.subr.bf16.mxu0 %v545
    %656 = vmatpush1.bf16.msra.mxu0 %v544
    %657 = vmatprep.subr.bf16.mxu0 %v548
    %658 = vmatpush1.bf16.msra.mxu0 %v547
    %659 = vmatprep.subr.bf16.mxu0 %v551
    %660 = vmatpush1.bf16.msra.mxu0 %v550
    %661 = vmatprep.mubr.bf16.mxu0 %v287
    %662 = vmatmul.mubr.bf16.gmra.mrb[0].mxu0 %v286
    %v663 = vpop.f32.mrb[0].mxu0
    %v664 = vadd.f32 %v293, %v663
    %v665 = vpop.f32.mrb[0].mxu0
    %v666 = vadd.f32 %v297, %v665
    %v667 = vpop.f32.mrb[0].mxu0
    %v668 = vpop.f32.mrb[0].mxu0
    %669 = vdwg.mxu0
    %670 = vmatprep.subr.bf16.mxu0 %v554
    %671 = vmatpush1.bf16.msra.mxu0 %v553
    %672 = vmatprep.subr.bf16.mxu0 %v557
    %673 = vmatpush1.bf16.msra.mxu0 %v556
    %674 = vmatprep.subr.bf16.mxu0 %v560
    %675 = vmatpush1.bf16.msra.mxu0 %v559
    %676 = vmatprep.subr.bf16.mxu0 %v563
    %677 = vmatpush1.bf16.msra.mxu0 %v562
    %678 = vmatprep.subr.bf16.mxu0 0
    %679 = vmatpush1.bf16.msra.mxu0 0
    %680 = vmatprep.subr.bf16.mxu0 0
    %681 = vmatpush1.bf16.msra.mxu0 0
    %682 = vmatprep.subr.bf16.mxu0 0
    %683 = vmatpush1.bf16.msra.mxu0 0
    %684 = vmatprep.subr.bf16.mxu0 0
    %685 = vmatpush1.bf16.msra.mxu0 0
    %686 = vmatprep.subr.bf16.mxu0 0
    %687 = vmatpush1.bf16.msra.mxu0 0
    %688 = vmatprep.subr.bf16.mxu0 0
    %689 = vmatpush1.bf16.msra.mxu0 0
    %690 = vmatprep.subr.bf16.mxu0 0
    %691 = vmatpush1.bf16.msra.mxu0 0
    %692 = vmatprep.subr.bf16.mxu0 0
    %693 = vmatpush1.bf16.msra.mxu0 0
    %694 = vmatprep.subr.bf16.mxu0 0
    %695 = vmatpush1.bf16.msra.mxu0 0
    %696 = vmatprep.subr.bf16.mxu0 0
    %697 = vmatpush1.bf16.msra.mxu0 0
    %698 = vmatprep.subr.bf16.mxu0 0
    %699 = vmatpush1.bf16.msra.mxu0 0
    %700 = vmatprep.subr.bf16.mxu0 0
    %701 = vmatpush1.bf16.msra.mxu0 0
    %702 = vmatprep.mubr.bf16.mxu0 0
    %703 = vmatmul.mubr.bf16.gmra.mrb[0].mxu0 %v627
    %v704 = vpop.f32.mrb[0].mxu0
    %v705 = vadd.f32 %v664, %v704
    %v706 = vpop.f32.mrb[0].mxu0
    %v707 = vadd.f32 %v666, %v706
    %v708 = vpop.f32.mrb[0].mxu0
    %v709 = vpop.f32.mrb[0].mxu0
    %710 = vdwg.mxu0
    %711 = vmatprep.subr.bf16.mxu0 0
    %712 = vmatpush1.bf16.msra.mxu0 %v507
    %713 = vmatprep.subr.bf16.mxu0 0
    %714 = vmatpush1.bf16.msra.mxu0 %v510
    %715 = vmatprep.subr.bf16.mxu0 0
    %716 = vmatpush1.bf16.msra.mxu0 %v513
    %717 = vmatprep.subr.bf16.mxu0 0
    %718 = vmatpush1.bf16.msra.mxu0 %v516
    %719 = vmatprep.subr.bf16.mxu0 0
    %720 = vmatpush1.bf16.msra.mxu0 %v519
    %721 = vmatprep.subr.bf16.mxu0 0
    %722 = vmatpush1.bf16.msra.mxu0 %v522
    %723 = vmatprep.subr.bf16.mxu0 0
    %724 = vmatpush1.bf16.msra.mxu0 %v525
    %725 = vmatprep.subr.bf16.mxu0 0
    %726 = vmatpush1.bf16.msra.mxu0 %v528
    %727 = vmatprep.subr.bf16.mxu0 0
    %728 = vmatpush1.bf16.msra.mxu0 %v531
    %729 = vmatprep.subr.bf16.mxu0 0
    %730 = vmatpush1.bf16.msra.mxu0 %v534
    %731 = vmatprep.subr.bf16.mxu0 0
    %732 = vmatpush1.bf16.msra.mxu0 %v537
    %733 = vmatprep.subr.bf16.mxu0 0
    %734 = vmatpush1.bf16.msra.mxu0 %v540
    %735 = vmatprep.subr.bf16.mxu0 0
    %736 = vmatpush1.bf16.msra.mxu0 %v543
    %737 = vmatprep.subr.bf16.mxu0 0
    %738 = vmatpush1.bf16.msra.mxu0 %v546
    %739 = vmatprep.subr.bf16.mxu0 0
    %740 = vmatpush1.bf16.msra.mxu0 %v549
    %741 = vmatprep.subr.bf16.mxu0 0
    %742 = vmatpush1.bf16.msra.mxu0 %v552
    %743 = vmatprep.mubr.bf16.mxu0 %v287
    %744 = vmatmul.mubr.bf16.gmra.mrb[0].mxu0 %v286
    %v745 = vpop.f32.mrb[0].mxu0
    %v746 = vadd.f32 %v301, %v745
    %v747 = vpop.f32.mrb[0].mxu0
    %v748 = vpop.f32.mrb[0].mxu0
    %v749 = vpop.f32.mrb[0].mxu0
    %750 = vdwg.mxu0
    %751 = vmatprep.subr.bf16.mxu0 0
    %752 = vmatpush1.bf16.msra.mxu0 %v555
    %753 = vmatprep.subr.bf16.mxu0 0
    %754 = vmatpush1.bf16.msra.mxu0 %v558
    %755 = vmatprep.subr.bf16.mxu0 0
    %756 = vmatpush1.bf16.msra.mxu0 %v561
    %757 = vmatprep.subr.bf16.mxu0 0
    %758 = vmatpush1.bf16.msra.mxu0 %v564
    %759 = vmatprep.subr.bf16.mxu0 0
    %760 = vmatpush1.bf16.msra.mxu0 0
    %761 = vmatprep.subr.bf16.mxu0 0
    %762 = vmatpush1.bf16.msra.mxu0 0
    %763 = vmatprep.subr.bf16.mxu0 0
    %764 = vmatpush1.bf16.msra.mxu0 0
    %765 = vmatprep.subr.bf16.mxu0 0
    %766 = vmatpush1.bf16.msra.mxu0 0
    %767 = vmatprep.subr.bf16.mxu0 0
    %768 = vmatpush1.bf16.msra.mxu0 0
    %769 = vmatprep.subr.bf16.mxu0 0
    %770 = vmatpush1.bf16.msra.mxu0 0
    %771 = vmatprep.subr.bf16.mxu0 0
    %772 = vmatpush1.bf16.msra.mxu0 0
    %773 = vmatprep.subr.bf16.mxu0 0
    %774 = vmatpush1.bf16.msra.mxu0 0
    %775 = vmatprep.subr.bf16.mxu0 0
    %776 = vmatpush1.bf16.msra.mxu0 0
    %777 = vmatprep.subr.bf16.mxu0 0
    %778 = vmatpush1.bf16.msra.mxu0 0
    %779 = vmatprep.subr.bf16.mxu0 0
    %780 = vmatpush1.bf16.msra.mxu0 0
    %781 = vmatprep.subr.bf16.mxu0 0
    %782 = vmatpush1.bf16.msra.mxu0 0
    %783 = vmatprep.mubr.bf16.mxu0 0
    %784 = vmatmul.mubr.bf16.gmra.mrb[0].mxu0 %v627
    %v785 = vpop.f32.mrb[0].mxu0
    %v786 = vadd.f32 %v746, %v785
    %v787 = vpop.f32.mrb[0].mxu0
    %v788 = vpop.f32.mrb[0].mxu0
    %v789 = vpop.f32.mrb[0].mxu0
    %790 = vdwg.mxu0
    %v791 = vtanh.pop %v705
    %v792 = vtanh.pop %v707
    %v793 = vtanh.pop %v786
    %v794 = vpack.c.bf16 %v791, %v791
    %v795 = vpack.c.bf16 %v792, %v792
    %v796 = vpack.c.bf16 %v793, %v793
    %v797 = vlaneseq
    %v798 = vshrl.u32 %v797, 7
    %v799 = vsub.s32 0, %v798
    %v800 = vrot.slane %v149, %v799
    %v841 = vunpack.c.l.b16 %v106
    %v842 = vunpack.c.l.b16 %v107
    %v843 = vunpack.c.l.b16 %v108
    %v844 = vunpack.c.l.b16 %v109
    %v845 = vunpack.c.l.b16 %v110
    %v846 = vunpack.c.l.b16 %v111
    %v847 = vunpack.c.l.b16 %v112
    %v848 = vunpack.c.l.b16 %v113
    %v849 = vunpack.c.l.b16 %v114
    %v850 = vunpack.c.l.b16 %v115
    %v851 = vunpack.c.l.b16 %v116
    %v852 = vunpack.c.l.b16 %v117
    %v853 = vunpack.c.l.b16 %v118
    %v854 = vunpack.c.l.b16 %v119
    %v855 = vunpack.c.l.b16 %v120
    %v856 = vunpack.c.l.b16 %v121
    %v857 = vunpack.c.l.b16 %v122
    %v858 = vunpack.c.l.b16 %v123
    %v859 = vunpack.c.l.b16 %v124
    %v860 = vunpack.c.l.b16 %v125
    %v861 = vunpack.c.l.b16 %v126
    %v862 = vunpack.c.l.b16 %v127
    %v863 = vunpack.c.l.b16 %v128
    %v864 = vunpack.c.l.b16 %v129
    %v865 = vunpack.c.l.b16 %v130
    %v866 = vunpack.c.l.b16 %v131
    %v867 = vunpack.c.l.b16 %v132
    %v868 = vunpack.c.l.b16 %v133
    %v869 = vunpack.c.l.b16 %v134
    %v870 = vunpack.c.l.b16 %v135
    %v871 = vunpack.c.l.b16 %v136
    %v872 = vunpack.c.l.b16 %v137
    %v873 = vunpack.c.l.b16 %v138
    %v874 = vunpack.c.l.b16 %v139
    %v875 = vunpack.c.l.b16 %v140
    %v876 = vunpack.c.l.b16 %v141
    %v877 = vunpack.c.l.b16 %v142
    %v878 = vunpack.c.l.b16 %v143
    %v879 = vunpack.c.l.b16 %v144
    %v880 = vunpack.c.l.b16 %v145
    %v881 = vpack.c.b16 %v842, %v841
    %v882 = vpack.c.b16 %v844, %v843
    %v883 = vpack.c.b16 %v846, %v845
    %v884 = vpack.c.b16 %v848, %v847
    %v885 = vpack.c.b16 %v850, %v849
    %v886 = vpack.c.b16 %v852, %v851
    %v887 = vpack.c.b16 %v854, %v853
    %v888 = vpack.c.b16 %v856, %v855
    %v889 = vpack.c.b16 %v858, %v857
    %v890 = vpack.c.b16 %v860, %v859
    %v891 = vpack.c.b16 %v862, %v861
    %v892 = vpack.c.b16 %v864, %v863
    %v893 = vpack.c.b16 %v866, %v865
    %v894 = vpack.c.b16 %v868, %v867
    %v895 = vpack.c.b16 %v870, %v869
    %v896 = vpack.c.b16 %v872, %v871
    %v897 = vpack.c.b16 %v874, %v873
    %v898 = vpack.c.b16 %v876, %v875
    %v899 = vpack.c.b16 %v878, %v877
    %v900 = vpack.c.b16 %v880, %v879
    %v922 = vsel %vm625, %v796, 0
    %924 = vmatprep.subr.bf16.mxu0 0
    %925 = vmatpush1.bf16.msra.mxu0 %v881
    %926 = vmatprep.subr.bf16.mxu0 0
    %927 = vmatpush1.bf16.msra.mxu0 %v882
    %928 = vmatprep.subr.bf16.mxu0 0
    %929 = vmatpush1.bf16.msra.mxu0 %v883
    %930 = vmatprep.subr.bf16.mxu0 0
    %931 = vmatpush1.bf16.msra.mxu0 %v884
    %932 = vmatprep.subr.bf16.mxu0 0
    %933 = vmatpush1.bf16.msra.mxu0 %v885
    %934 = vmatprep.subr.bf16.mxu0 0
    %935 = vmatpush1.bf16.msra.mxu0 %v886
    %936 = vmatprep.subr.bf16.mxu0 0
    %937 = vmatpush1.bf16.msra.mxu0 %v887
    %938 = vmatprep.subr.bf16.mxu0 0
    %939 = vmatpush1.bf16.msra.mxu0 %v888
    %940 = vmatprep.subr.bf16.mxu0 0
    %941 = vmatpush1.bf16.msra.mxu0 %v889
    %942 = vmatprep.subr.bf16.mxu0 0
    %943 = vmatpush1.bf16.msra.mxu0 %v890
    %944 = vmatprep.subr.bf16.mxu0 0
    %945 = vmatpush1.bf16.msra.mxu0 %v891
    %946 = vmatprep.subr.bf16.mxu0 0
    %947 = vmatpush1.bf16.msra.mxu0 %v892
    %948 = vmatprep.subr.bf16.mxu0 0
    %949 = vmatpush1.bf16.msra.mxu0 %v893
    %950 = vmatprep.subr.bf16.mxu0 0
    %951 = vmatpush1.bf16.msra.mxu0 %v894
    %952 = vmatprep.subr.bf16.mxu0 0
    %953 = vmatpush1.bf16.msra.mxu0 %v895
    %954 = vmatprep.subr.bf16.mxu0 0
    %955 = vmatpush1.bf16.msra.mxu0 %v896
    %956 = vmatprep.mubr.bf16.mxu0 %v795
    %957 = vmatmul.mubr.bf16.gmra.mrb[0].mxu0 %v794
    %v958 = vpop.f32.mrb[0].mxu0
    %v959 = vadd.f32 %v800, %v958
    %v960 = vpop.f32.mrb[0].mxu0
    %v961 = vpop.f32.mrb[0].mxu0
    %v962 = vpop.f32.mrb[0].mxu0
    %963 = vdwg.mxu0
    %964 = vmatprep.subr.bf16.mxu0 0
    %965 = vmatpush1.bf16.msra.mxu0 %v897
    %966 = vmatprep.subr.bf16.mxu0 0
    %967 = vmatpush1.bf16.msra.mxu0 %v898
    %968 = vmatprep.subr.bf16.mxu0 0
    %969 = vmatpush1.bf16.msra.mxu0 %v899
    %970 = vmatprep.subr.bf16.mxu0 0
    %971 = vmatpush1.bf16.msra.mxu0 %v900
    %972 = vmatprep.subr.bf16.mxu0 0
    %973 = vmatpush1.bf16.msra.mxu0 0
    %974 = vmatprep.subr.bf16.mxu0 0
    %975 = vmatpush1.bf16.msra.mxu0 0
    %976 = vmatprep.subr.bf16.mxu0 0
    %977 = vmatpush1.bf16.msra.mxu0 0
    %978 = vmatprep.subr.bf16.mxu0 0
    %979 = vmatpush1.bf16.msra.mxu0 0
    %980 = vmatprep.subr.bf16.mxu0 0
    %981 = vmatpush1.bf16.msra.mxu0 0
    %982 = vmatprep.subr.bf16.mxu0 0
    %983 = vmatpush1.bf16.msra.mxu0 0
    %984 = vmatprep.subr.bf16.mxu0 0
    %985 = vmatpush1.bf16.msra.mxu0 0
    %986 = vmatprep.subr.bf16.mxu0 0
    %987 = vmatpush1.bf16.msra.mxu0 0
    %988 = vmatprep.subr.bf16.mxu0 0
    %989 = vmatpush1.bf16.msra.mxu0 0
    %990 = vmatprep.subr.bf16.mxu0 0
    %991 = vmatpush1.bf16.msra.mxu0 0
    %992 = vmatprep.subr.bf16.mxu0 0
    %993 = vmatpush1.bf16.msra.mxu0 0
    %994 = vmatprep.subr.bf16.mxu0 0
    %995 = vmatpush1.bf16.msra.mxu0 0
    %996 = vmatprep.mubr.bf16.mxu0 0
    %997 = vmatmul.mubr.bf16.gmra.mrb[0].mxu0 %v922
    %v998 = vpop.f32.mrb[0].mxu0
    %v999 = vadd.f32 %v959, %v998
    %v1000 = vpop.f32.mrb[0].mxu0
    %v1001 = vpop.f32.mrb[0].mxu0
    %v1002 = vpop.f32.mrb[0].mxu0
    %1003 = vdwg.mxu0
    %1004 = vst [vmem:[#allocation2] sm:$0x3] %v999
    // Predicated region
    $region14: #{tpu_custom_call.1} parent=1 // pred_check
      _
    $region15: #{tpu_custom_call.1} parent=1 // pred_check_branch
      %1006 = sbr.rel (0) target = $region17
    $region16: #{tpu_custom_call.1} parent=1 // pred_region
      %s1008 = ssub.s32 32, 32
      %1009 = vsyncadd [#allocation3], %s1008
      %s1011 = sshll.u32 [#allocation2], 4
      %s1012 = int_to_ptr.vmem [resolvable:$true] %s1011
      %1014 = dma.vmem_to_hbm [thread:$0]  %s1012, 32, %s3, [#allocation3]
    $region17: #{tpu_custom_call.1} parent=1 // pred_fallthru
      _
    // Predicated region
    $region18: #{tpu_custom_call.1} parent=1 // pred_check
      _
    $region19: #{tpu_custom_call.1} parent=1 // pred_check_branch
      %1016 = sbr.rel (0) target = $region21
    $region20: #{tpu_custom_call.1} parent=1 // pred_region
      %1017 = dma.done [#allocation3], 32
    $region21: #{tpu_custom_call.1} parent=1 // pred_fallthru
      _
    %1018 = vsyncpa [#allocation3], 1

</llo_original>
